<compile_context>
chip_gen: v5e
topology: v5e:2x2
jax: 0.10.0
libtpu: 0.0.40
codegen_flags: <defaults>
</compile_context>

<pallas_src>
import functools
import math

import jax
import jax.numpy as jnp
from jax.experimental import pallas as pl
from jax.experimental.pallas import tpu as pltpu


def _round_up(x, m):
    return (x + m - 1) // m * m


def _pad2d(x, rows, cols):
    r, c = x.shape
    if r == rows and c == cols:
        return x
    return jnp.pad(x, ((0, rows - r), (0, cols - c)))


# ----------------------------------------------------------------------------
# Fused matmul (+shift, +optional residual / projection shortcut, +ReLU)
# ----------------------------------------------------------------------------

def _mm_kernel_plain(a_ref, w_ref, c_ref, o_ref, *, relu):
    y = jnp.dot(a_ref[...], w_ref[...], preferred_element_type=jnp.float32)
    y = y + c_ref[...]
    if relu:
        y = jnp.maximum(y, 0.0)
    o_ref[...] = y.astype(o_ref.dtype)


def _mm_kernel_res(a_ref, w_ref, c_ref, r_ref, o_ref):
    y = jnp.dot(a_ref[...], w_ref[...], preferred_element_type=jnp.float32)
    y = y + c_ref[...] + r_ref[...].astype(jnp.float32)
    o_ref[...] = jnp.maximum(y, 0.0).astype(o_ref.dtype)


def _mm_kernel_proj(a_ref, w_ref, c_ref, a2_ref, w2_ref, c2_ref, o_ref):
    y = jnp.dot(a_ref[...], w_ref[...], preferred_element_type=jnp.float32)
    y = y + c_ref[...]
    y = y + jnp.dot(a2_ref[...], w2_ref[...], preferred_element_type=jnp.float32)
    y = y + c2_ref[...]
    o_ref[...] = jnp.maximum(y, 0.0).astype(o_ref.dtype)


def fused_matmul(a, w, shift, *, relu, residual=None, proj=None,
                 out_dtype=jnp.bfloat16):
    """out = epilogue(a @ w + shift).

    a:(M,K) bf16, w:(K,N) bf16, shift:(N,) f32.
      residual=(M,N) bf16      -> relu(a@w + shift + residual)
      proj=(a2, w2, shift2)    -> relu(a@w + shift + a2@w2 + shift2)
    Single K step (whole K per block), f32 accumulation on the MXU.
    """
    M, K = a.shape
    Kw, N = w.shape
    assert K == Kw

    tm = min(128, _round_up(M, 16))          # >=16 rows for bf16 sublane packing
    tn = min(256, _round_up(N, 128))         # lane-dense output stores
    Mp = _round_up(M, tm)
    Np = _round_up(N, tn)
    Kp = _round_up(K, 128)                   # full K in one block (<= 4608 here)

    a_p = _pad2d(a, Mp, Kp)
    w_p = _pad2d(w, Kp, Np)
    c_p = _pad2d(shift.reshape(1, N).astype(jnp.float32), 1, Np)

    a_spec = pl.BlockSpec((tm, Kp), lambda i, j: (i, 0))
    w_spec = pl.BlockSpec((Kp, tn), lambda i, j: (0, j))
    c_spec = pl.BlockSpec((1, tn), lambda i, j: (0, j))
    o_spec = pl.BlockSpec((tm, tn), lambda i, j: (i, j))

    if proj is not None:
        a2, w2, shift2 = proj
        K2 = a2.shape[1]
        K2p = _round_up(K2, 128)
        operands = (a_p, w_p, c_p,
                    _pad2d(a2, Mp, K2p),
                    _pad2d(w2, K2p, Np),
                    _pad2d(shift2.reshape(1, N).astype(jnp.float32), 1, Np))
        in_specs = [a_spec, w_spec, c_spec,
                    pl.BlockSpec((tm, K2p), lambda i, j: (i, 0)),
                    pl.BlockSpec((K2p, tn), lambda i, j: (0, j)),
                    pl.BlockSpec((1, tn), lambda i, j: (0, j))]
        kernel = _mm_kernel_proj
    elif residual is not None:
        operands = (a_p, w_p, c_p, _pad2d(residual, Mp, Np))
        in_specs = [a_spec, w_spec, c_spec,
                    pl.BlockSpec((tm, tn), lambda i, j: (i, j))]
        kernel = _mm_kernel_res
    else:
        operands = (a_p, w_p, c_p)
        in_specs = [a_spec, w_spec, c_spec]
        kernel = functools.partial(_mm_kernel_plain, relu=relu)

    out = pl.pallas_call(
        kernel,
        out_shape=jax.ShapeDtypeStruct((Mp, Np), out_dtype),
        grid_spec=pltpu.PrefetchScalarGridSpec(
            num_scalar_prefetch=0,
            grid=(Mp // tm, Np // tn),
            in_specs=in_specs,
            out_specs=o_spec,
        ),
        compiler_params=pltpu.CompilerParams(
            dimension_semantics=("parallel", "parallel")),
    )(*operands)
    return out[:M, :N]


# ----------------------------------------------------------------------------
# Conv = im2col (JAX indexing glue, bf16) + fused matmul
# ----------------------------------------------------------------------------

def _im2col(x, kh, kw, stride, pad):
    N, H, W, Cin = x.shape
    Ho = (H + 2 * pad - kh) // stride + 1
    Wo = (W + 2 * pad - kw) // stride + 1
    if kh == 1 and kw == 1 and pad == 0:
        patches = x[:, ::stride, ::stride, :].reshape(N * Ho * Wo, Cin)
        return patches, Ho, Wo
    xp = jnp.pad(x, ((0, 0), (pad, pad), (pad, pad), (0, 0)))
    cols = []
    for i in range(kh):
        for j in range(kw):
            cols.append(xp[:, i:i + stride * (Ho - 1) + 1:stride,
                           j:j + stride * (Wo - 1) + 1:stride, :])
    patches = jnp.concatenate(cols, axis=-1).reshape(N * Ho * Wo, kh * kw * Cin)
    return patches, Ho, Wo


def conv_layer(x, layer, *, stride, pad, relu, residual=None, proj=None,
               out_dtype=jnp.bfloat16):
    """x: NHWC bf16; layer: {'w': (KH*KW*Cin, Cout) bf16 (BN-scale folded),
    'b': (Cout,) f32 shift, 'kh', 'kw'}."""
    N = x.shape[0]
    patches, Ho, Wo = _im2col(x, layer["kh"], layer["kw"], stride, pad)
    out = fused_matmul(patches, layer["w"], layer["b"], relu=relu,
                       residual=residual, proj=proj, out_dtype=out_dtype)
    return out.reshape(N, Ho, Wo, layer["w"].shape[1])


# ----------------------------------------------------------------------------
# MaxPool2d(3, stride=2, padding=1)
# ----------------------------------------------------------------------------

def _max3_kernel(a_ref, b_ref, c_ref, o_ref):
    o_ref[...] = jnp.maximum(jnp.maximum(a_ref[...], b_ref[...]), c_ref[...])


def maxpool2d_3x3_s2_p1(x):
    N, H, W, C = x.shape
    K, S, P = 3, 2, 1
    Ho = (H + 2 * P - K) // S + 1
    Wo = (W + 2 * P - K) // S + 1
    neg = jnp.asarray(-jnp.inf, x.dtype)
    xp = jnp.pad(x, ((0, 0), (P, P), (P, P), (0, 0)), constant_values=neg)
    # W-direction pairwise max tree over strided views (fused by XLA, no 9x stack).
    wmax = jnp.maximum(
        jnp.maximum(xp[:, :, 0:S * (Wo - 1) + 1:S, :],
                    xp[:, :, 1:1 + S * (Wo - 1) + 1:S, :]),
        xp[:, :, 2:2 + S * (Wo - 1) + 1:S, :])                  # (N, H+2P, Wo, C)
    # H-direction: 3-way elementwise max in a row-tiled Pallas kernel.
    taps = [wmax[:, kh:kh + S * (Ho - 1) + 1:S, :, :].reshape(N * Ho * Wo, C)
            for kh in range(K)]
    M = N * Ho * Wo
    tm = min(512, _round_up(M, 16))
    Mp = _round_up(M, tm)
    taps = [_pad2d(t, Mp, C) for t in taps]
    out = pl.pallas_call(
        _max3_kernel,
        out_shape=jax.ShapeDtypeStruct((Mp, C), x.dtype),
        grid_spec=pltpu.PrefetchScalarGridSpec(
            num_scalar_prefetch=0,
            grid=(Mp // tm,),
            in_specs=[pl.BlockSpec((tm, C), lambda i: (i, 0)) for _ in range(3)],
            out_specs=pl.BlockSpec((tm, C), lambda i: (i, 0)),
        ),
        compiler_params=pltpu.CompilerParams(dimension_semantics=("parallel",)),
    )(*taps)
    return out[:M].reshape(N, Ho, Wo, C)


# ----------------------------------------------------------------------------
# Global average pool (AdaptiveAvgPool2d((1,1)) + flatten)
# ----------------------------------------------------------------------------

def _mean_kernel(x_ref, o_ref):
    o_ref[...] = jnp.mean(x_ref[...].astype(jnp.float32), axis=1)


def global_avg_pool(x):
    N, H, W, C = x.shape
    HW = H * W
    x3 = x.reshape(N, HW, C)
    cb = min(512, C)
    if C % cb != 0:
        cb = C
    return pl.pallas_call(
        _mean_kernel,
        out_shape=jax.ShapeDtypeStruct((N, C), jnp.float32),
        grid_spec=pltpu.PrefetchScalarGridSpec(
            num_scalar_prefetch=0,
            grid=(C // cb,),
            in_specs=[pl.BlockSpec((N, HW, cb), lambda j: (0, 0, j))],
            out_specs=pl.BlockSpec((N, cb), lambda j: (0, j)),
        ),
        compiler_params=pltpu.CompilerParams(dimension_semantics=("parallel",)),
    )(x3)


# ----------------------------------------------------------------------------
# Parameters (deterministic synthetic init; BN folded, bf16 weights)
# ----------------------------------------------------------------------------

class _KeyGen:
    def __init__(self, key):
        self.key = key

    def __call__(self):
        self.key, sub = jax.random.split(self.key)
        return sub


def _init_conv(kg, kh, kw, cin, cout):
    fan_in = kh * kw * cin
    return jax.random.normal(kg(), (kh, kw, cin, cout), jnp.float32) / math.sqrt(fan_in)


def _init_bn(kg, c, eps=1e-5):
    gamma = 1.0 + 0.1 * jax.random.normal(kg(), (c,), jnp.float32)
    beta = 0.1 * jax.random.normal(kg(), (c,), jnp.float32)
    mean = 0.1 * jax.random.normal(kg(), (c,), jnp.float32)
    var = 1.0 + 0.1 * jnp.abs(jax.random.normal(kg(), (c,), jnp.float32))
    scale = gamma / jnp.sqrt(var + eps)
    shift = beta - mean * scale
    return scale, shift


def _fold_conv_bn(w, bn):
    """Fold BN scale into conv weights; keep only the shift for the epilogue."""
    scale, shift = bn
    kh, kw, cin, cout = w.shape
    wf = (w * scale.reshape(1, 1, 1, cout)).reshape(kh * kw * cin, cout)
    return {"w": wf.astype(jnp.bfloat16), "b": shift.astype(jnp.float32),
            "kh": kh, "kw": kw}


def init_resnet50(key, num_classes=4):
    kg = _KeyGen(key)
    params = {"conv1": _fold_conv_bn(_init_conv(kg, 7, 7, 3, 64), _init_bn(kg, 64))}
    layers = []
    in_ch = 64
    # torchvision resnet50: (width, num_blocks, stride) per stage
    for width, n_blocks, stride in ((64, 3, 1), (128, 4, 2), (256, 6, 2), (512, 3, 2)):
        blocks = []
        for b in range(n_blocks):
            s = stride if b == 0 else 1
            blk = {
                "c1": _fold_conv_bn(_init_conv(kg, 1, 1, in_ch, width), _init_bn(kg, width)),
                "c2": _fold_conv_bn(_init_conv(kg, 3, 3, width, width), _init_bn(kg, width)),
                "c3": _fold_conv_bn(_init_conv(kg, 1, 1, width, width * 4), _init_bn(kg, width * 4)),
                "stride": s,
            }
            if b == 0:  # projection shortcut (channel change and/or stride)
                blk["down"] = _fold_conv_bn(_init_conv(kg, 1, 1, in_ch, width * 4),
                                            _init_bn(kg, width * 4))
            blocks.append(blk)
            in_ch = width * 4
        layers.append(blocks)
    params["layers"] = layers
    params["fc_w"] = (jax.random.normal(kg(), (2048, num_classes), jnp.float32)
                      / math.sqrt(2048.0)).astype(jnp.bfloat16)
    params["fc_b"] = 0.1 * jax.random.normal(kg(), (num_classes,), jnp.float32)
    return params


# ----------------------------------------------------------------------------
# Forward pass
# ----------------------------------------------------------------------------

def _bottleneck(x, blk):
    s = blk["stride"]
    out = conv_layer(x, blk["c1"], stride=1, pad=0, relu=True)
    out = conv_layer(out, blk["c2"], stride=s, pad=1, relu=True)
    if "down" in blk:
        # Projection shortcut fused as a second matmul in the conv3 epilogue.
        idp, _, _ = _im2col(x, 1, 1, s, 0)
        return conv_layer(out, blk["c3"], stride=1, pad=0, relu=True,
                          proj=(idp, blk["down"]["w"], blk["down"]["b"]))
    # Identity shortcut fused as a residual add in the conv3 epilogue.
    res = x.reshape(-1, x.shape[-1])
    return conv_layer(out, blk["c3"], stride=1, pad=0, relu=True, residual=res)


def resnet50_forward(params, x_nchw):
    """Input: NCHW float32 (like the PyTorch module); output: (N, num_classes) f32."""
    x = jnp.transpose(x_nchw, (0, 2, 3, 1)).astype(jnp.bfloat16)   # NCHW -> NHWC bf16
    x = conv_layer(x, params["conv1"], stride=2, pad=3, relu=True)
    x = maxpool2d_3x3_s2_p1(x)
    for stage in params["layers"]:
        for blk in stage:
            x = _bottleneck(x, blk)
    feat = global_avg_pool(x)                                       # (N, 2048) f32
    num_classes = params["fc_w"].shape[1]
    logits = fused_matmul(feat.astype(jnp.bfloat16), params["fc_w"], params["fc_b"],
                          relu=False, out_dtype=jnp.float32)
    return logits


if __name__ == "__main__":
    key = jax.random.PRNGKey(0)
    pkey, xkey = jax.random.split(key)
    params = init_resnet50(pkey, num_classes=4)
    # small NCHW input (batch=2, 3 channels, 32x32 spatial) matching the module
    x = jax.random.normal(xkey, (2, 3, 32, 32), jnp.float32)
    logits = resnet50_forward(params, x)
    logits = jax.block_until_ready(logits)
    assert logits.shape == (2, 4), logits.shape
    assert bool(jnp.all(jnp.isfinite(logits)))
    print("KERNEL_OK")
</pallas_src>

<mosaic_0001>
module attributes {stable_mosaic.version = 11 : i64} {
  func.func @_mm_kernel_plain(%arg0: i32, %arg1: i32, %arg2: memref<128x256xbf16, #tpu.memory_space<vmem>>, %arg3: memref<256x128xbf16, #tpu.memory_space<vmem>>, %arg4: memref<1x128xf32, #tpu.memory_space<vmem>>, %arg5: memref<128x128xbf16, #tpu.memory_space<vmem>>) attributes {dimension_semantics = [#tpu.dimension_semantics<parallel>, #tpu.dimension_semantics<parallel>], iteration_bounds = array<i64: 4, 1>, scalar_prefetch = 0 : i64, scratch_operands = 0 : i64, tpu.core_type = #tpu.core_type<tc>, window_params = [{transform_indices = @transform_0, window_bounds = array<i64: 128, 256>}, {transform_indices = @transform_1, window_bounds = array<i64: 256, 128>}, {transform_indices = @transform_2, window_bounds = array<i64: 1, 128>}, {transform_indices = @transform_3, window_bounds = array<i64: 128, 128>}]} {
    %c0 = arith.constant 0 : index
    %c0_0 = arith.constant 0 : index
    %0 = vector.load %arg2[%c0, %c0_0] : memref<128x256xbf16, #tpu.memory_space<vmem>>, vector<128x256xbf16>
    %c0_1 = arith.constant 0 : index
    %c0_2 = arith.constant 0 : index
    %1 = vector.load %arg3[%c0_1, %c0_2] : memref<256x128xbf16, #tpu.memory_space<vmem>>, vector<256x128xbf16>
    %cst = arith.constant dense<0.000000e+00> : vector<128x128xf32>
    %2 = tpu.matmul %0, %1, %cst {dimension_numbers = #tpu.dot_dimension_numbers<[1], [0], [0], [1], [0, 0, 1, 1], [], []>} : vector<128x256xbf16>, vector<256x128xbf16>, vector<128x128xf32> -> vector<128x128xf32>
    %c0_3 = arith.constant 0 : index
    %c0_4 = arith.constant 0 : index
    %3 = vector.load %arg4[%c0_3, %c0_4] : memref<1x128xf32, #tpu.memory_space<vmem>>, vector<1x128xf32>
    %4 = vector.broadcast %3 : vector<1x128xf32> to vector<128x128xf32>
    %5 = arith.addf %2, %4 : vector<128x128xf32>
    %cst_5 = arith.constant 0.000000e+00 : f32
    %6 = vector.broadcast %cst_5 : f32 to vector<128x128xf32>
    %7 = arith.maximumf %5, %6 : vector<128x128xf32>
    %8 = arith.truncf %7 : vector<128x128xf32> to vector<128x128xbf16>
    %c0_6 = arith.constant 0 : index
    %c0_7 = arith.constant 0 : index
    %9 = vector.load %arg5[%c0_6, %c0_7] : memref<128x128xbf16, #tpu.memory_space<vmem>>, vector<128x128xbf16>
    tpu.vector_store %arg5[%c0_6, %c0_7], %8 {strides = array<i32>} : memref<128x128xbf16, #tpu.memory_space<vmem>>, vector<128x128xbf16>,
    return
  }
  func.func @transform_0(%arg0: i32, %arg1: i32) -> (i32, i32) {
    %c0_i32 = arith.constant 0 : i32
    %c0_i32_0 = arith.constant 0 : i32
    return %arg0, %c0_i32 : i32, i32
  }
  func.func @transform_1(%arg0: i32, %arg1: i32) -> (i32, i32) {
    %c0_i32 = arith.constant 0 : i32
    %c0_i32_0 = arith.constant 0 : i32
    return %c0_i32, %arg1 : i32, i32
  }
  func.func @transform_2(%arg0: i32, %arg1: i32) -> (i32, i32) {
    %c0_i32 = arith.constant 0 : i32
    %c0_i32_0 = arith.constant 0 : i32
    return %c0_i32, %arg1 : i32, i32
  }
  func.func @transform_3(%arg0: i32, %arg1: i32) -> (i32, i32) {
    %c0_i32 = arith.constant 0 : i32
    return %arg0, %arg1 : i32, i32
  }
}

</mosaic_0001>

<llo_original>
// kernel: tpu_custom_call.1
$region0: #{tpu_custom_call.1}
  #allocation0 [shape = 'u32[]', space=smem, size = 0x4, offset = 0x4, fixed_abs, tag = 'smem constant byte address 0x4 - core index']
  #allocation1 [shape = 'u32[72,128]{1,0:T(1,128)}', space=vmem, size = 0x9000, scoped, tag = 'internal scratch']
  %s0 = inlined_call_operand.hbm [shape: bf16[512,256], index: 0, kind: input, shape index: {}]
  %s1 = inlined_call_operand.hbm [shape: bf16[256,128], index: 1, kind: input, shape index: {}]
  %s2 = inlined_call_operand.vmem [shape: f32[1,128], index: 2, kind: input, shape index: {}]
  %s3 = inlined_call_operand.hbm [shape: bf16[512,128], index: 3, kind: output, shape index: {}]
  %s4 = sld [smem:[#allocation0]]
  $region53: #{tpu_custom_call.1} parent=0
    _
  %s6 = ssub.s32 1, %s4
  %s7 = scalar_select 0, %s6, %s4
  $region1: #{tpu_custom_call.1} parent=0
    #allocation2 [shape = 'u8[131072]{0}', space=vmem, size = 0x20000, scoped, tag = 'input window, operand 0']
    #allocation3 [shape = 's32[2]{0}', space=sflag, size = 0x8, scoped, tag = 'scoped memory for tpu_custom_call.1']
    #allocation4 [shape = 's32[2]{0}', space=sflag, size = 0x8, scoped, tag = 'scoped memory for tpu_custom_call.1']
    #allocation5 [shape = 'u8[65536]{0}', space=vmem, size = 0x10000, scoped, tag = 'input window, operand 1, single buffered']
    #allocation6 [shape = 's32[1]{0}', space=sflag, size = 0x4, scoped, tag = 'scoped memory for tpu_custom_call.1']
    #allocation7 [shape = 'u8[65536]{0}', space=vmem, size = 0x10000, scoped, tag = 'output window, operand 0']
    %8 = vsyncpa [#allocation3], 0
    %s9 = scalar_lea.sflag [#allocation3], 1
    %10 = vsyncpa %s9, 0
    %11 = vsyncpa [#allocation6], 0
    %12 = vsyncpa [#allocation4], 0
    %s13 = scalar_lea.sflag [#allocation4], 1
    %14 = vsyncpa %s13, 0
    loop: start=0, step=1, limit=6
    $region2: #{tpu_custom_call.1} parent=1 // loop_pre_header
      _
    $region3: #{tpu_custom_call.1} parent=1 // loop_header
      %s16 = sphi 0, %s20
      %p17 = scmp.ge.s32.totalorder %s16, 6
      %s23 = sphi 0, %s35
      %s24 = sphi 0, %s31
      %s25 = sphi 0, %s23
      %s26 = sphi 0, %s24
      %s27 = sphi 0, %s25
      %s28 = sphi 0, %s26
      %s38 = sphi 0, %s40
      %s41 = sphi 0, %s38
      %s42 = sphi 0, %s41
      %s58 = sphi 0, %s42
      %s64 = sphi 0, %s66
      %s67 = sphi 0, %s64
      %s68 = sphi 0, %s67
      %s84 = sphi 0, %s68
      %s90 = sphi 0, %s92
      %s93 = sphi 0, %s90
      %s94 = sphi 0, %s93
      %s110 = sphi 0, %s94
      %s118 = sphi 0, %s120
      %s121 = sphi 0, %s118
      %s122 = sphi 0, %s121
      %s138 = sphi 0, %s122
    $region4: #{tpu_custom_call.1} parent=1 // loop_header_branch
      %19 = sbr.rel (%p17) target = $region8
    $region5: #{tpu_custom_call.1} parent=1 // loop_body
      %s21 = ssub.s32 %s16, 1
      %s22 = ssub.s32 %s16, 2
      %s29 = sadd.s32 1, %s24
      %p30 = scmp.ge.s32.totalorder %s29, 1
      %s31 = scalar_select %p30, 0, %s29
      %s32 = sadd.s32 1, %s23
      %s33 = scalar_select %p30, %s32, %s23
      %p34 = scmp.ge.s32.totalorder %s33, 4
      %s35 = scalar_select %p34, 0, %s33
      %s36 = ssub.s32 %s23, %s35
      %p37 = scmp.eq.s32.totalorder %s36, 0
      %s39 = sadd.s32 %s38, 1
      %s40 = scalar_select %p37, %s38, %s39
      %p43 = pneg %p37
      %p44 = scmp.eq.s32.totalorder %s16, 3
      %p45 = por %p43, %p44
      %p46 = scmp.ne.s32.totalorder %s38, %s41
      %p47 = scmp.eq.s32.totalorder %s16, 0
      %p48 = por %p46, %p47
      %p49 = scmp.ne.s32.totalorder %s38, %s41
      %p50 = scmp.eq.s32.totalorder %s21, 3
      %p51 = por %p49, %p50
      %p52 = scmp.ne.s32.totalorder %s41, %s42
      %p53 = scmp.eq.s32.totalorder %s21, 0
      %p54 = por %p52, %p53
      %p55 = scmp.ne.s32.totalorder %s41, %s42
      %p56 = scmp.eq.s32.totalorder %s22, 3
      %p57 = por %p55, %p56
      %p59 = scmp.ne.s32.totalorder %s42, %s58
      %p60 = scmp.eq.s32.totalorder %s22, 0
      %p61 = por %p59, %p60
      %s62 = ssub.s32 %s24, %s31
      %p63 = scmp.eq.s32.totalorder %s62, 0
      %s65 = sadd.s32 %s64, 1
      %s66 = scalar_select %p63, %s64, %s65
      %p69 = pneg %p63
      %p70 = scmp.eq.s32.totalorder %s16, 3
      %p71 = por %p69, %p70
      %p72 = scmp.ne.s32.totalorder %s64, %s67
      %p73 = scmp.eq.s32.totalorder %s16, 0
      %p74 = por %p72, %p73
      %p75 = scmp.ne.s32.totalorder %s64, %s67
      %p76 = scmp.eq.s32.totalorder %s21, 3
      %p77 = por %p75, %p76
      %p78 = scmp.ne.s32.totalorder %s67, %s68
      %p79 = scmp.eq.s32.totalorder %s21, 0
      %p80 = por %p78, %p79
      %p81 = scmp.ne.s32.totalorder %s67, %s68
      %p82 = scmp.eq.s32.totalorder %s22, 3
      %p83 = por %p81, %p82
      %p85 = scmp.ne.s32.totalorder %s68, %s84
      %p86 = scmp.eq.s32.totalorder %s22, 0
      %p87 = por %p85, %p86
      %s88 = ssub.s32 %s24, %s31
      %p89 = scmp.eq.s32.totalorder %s88, 0
      %s91 = sadd.s32 %s90, 1
      %s92 = scalar_select %p89, %s90, %s91
      %p95 = pneg %p89
      %p96 = scmp.eq.s32.totalorder %s16, 3
      %p97 = por %p95, %p96
      %p98 = scmp.ne.s32.totalorder %s90, %s93
      %p99 = scmp.eq.s32.totalorder %s16, 0
      %p100 = por %p98, %p99
      %p101 = scmp.ne.s32.totalorder %s90, %s93
      %p102 = scmp.eq.s32.totalorder %s21, 3
      %p103 = por %p101, %p102
      %p104 = scmp.ne.s32.totalorder %s93, %s94
      %p105 = scmp.eq.s32.totalorder %s21, 0
      %p106 = por %p104, %p105
      %p107 = scmp.ne.s32.totalorder %s93, %s94
      %p108 = scmp.eq.s32.totalorder %s22, 3
      %p109 = por %p107, %p108
      %p111 = scmp.ne.s32.totalorder %s94, %s110
      %p112 = scmp.eq.s32.totalorder %s22, 0
      %p113 = por %p111, %p112
      %s114 = ssub.s32 %s23, %s35
      %s115 = ssub.s32 %s24, %s31
      %s116 = sor.u32 %s114, %s115
      %p117 = scmp.eq.s32.totalorder %s116, 0
      %s119 = sadd.s32 %s118, 1
      %s120 = scalar_select %p117, %s118, %s119
      %p123 = pneg %p117
      %p124 = scmp.eq.s32.totalorder %s16, 3
      %p125 = por %p123, %p124
      %p126 = scmp.ne.s32.totalorder %s118, %s121
      %p127 = scmp.eq.s32.totalorder %s16, 0
      %p128 = por %p126, %p127
      %p129 = scmp.ne.s32.totalorder %s118, %s121
      %p130 = scmp.eq.s32.totalorder %s21, 3
      %p131 = por %p129, %p130
      %p132 = scmp.ne.s32.totalorder %s121, %s122
      %p133 = scmp.eq.s32.totalorder %s21, 0
      %p134 = por %p132, %p133
      %p135 = scmp.ne.s32.totalorder %s121, %s122
      %p136 = scmp.eq.s32.totalorder %s22, 3
      %p137 = por %p135, %p136
      %p139 = scmp.ne.s32.totalorder %s122, %s138
      %p140 = scmp.eq.s32.totalorder %s22, 0
      %p141 = por %p139, %p140
      %p142 = scmp.le.s32.totalorder 1, %s16
      %p143 = scmp.lt.s32.totalorder %s16, 5
      %p144 = pnand %p142, %p143
      %p145 = pneg %p144
      // Predicated region
      $region9: #{tpu_custom_call.1} parent=5 // pred_check
        _
      $region10: #{tpu_custom_call.1} parent=5 // pred_check_branch
        %147 = sbr.rel (%p144) target = $region12
      $region11: #{tpu_custom_call.1} parent=5 // pred_region
        %s148 = ssub.s32 %s16, 1
        // Predicated region
        $region13: #{tpu_custom_call.1} parent=11 // pred_check
          %p149 = pneg %p80
        $region14: #{tpu_custom_call.1} parent=11 // pred_check_branch
          %151 = sbr.rel (%p149) target = $region16
        $region15: #{tpu_custom_call.1} parent=11 // pred_region
          %153 = vsyncadd [#allocation6], 0
          %s154 = smul.addr %s26, 4
          %s155 = scalar_lea.hbm %s1, %s154
          %s156 = sshll.u32 %s155, 4
          %s157 = int_to_ptr.hbm [resolvable:$true] %s156
          %s158 = sshll.u32 [#allocation5], 4
          %s159 = int_to_ptr.vmem [resolvable:$true] %s158
          %164 = dma.hbm_to_vmem [thread:$0]  %s157, 2048, %s159, [#allocation6], 64, 64, 4
        $region16: #{tpu_custom_call.1} parent=11 // pred_fallthru
          _
        // Predicated region
        $region17: #{tpu_custom_call.1} parent=11 // pred_check
          %p165 = pneg %p106
        $region18: #{tpu_custom_call.1} parent=11 // pred_check_branch
          %167 = sbr.rel (%p165) target = $region20
        $region19: #{tpu_custom_call.1} parent=11 // pred_region
          %p168 = scmp.lt.s32.totalorder %s26, 0
          %s169 = scalar_select %p168, %s26, 0
          %s170 = scalar_lea.vmem %s2, %s169
        $region20: #{tpu_custom_call.1} parent=11 // pred_fallthru
          _
      $region12: #{tpu_custom_call.1} parent=5 // pred_fallthru
        _
      %p171 = scmp.lt.s32.totalorder %s16, 4
      // Predicated region
      $region21: #{tpu_custom_call.1} parent=5 // pred_check
        %p172 = pneg %p171
      $region22: #{tpu_custom_call.1} parent=5 // pred_check_branch
        %174 = sbr.rel (%p172) target = $region24
      $region23: #{tpu_custom_call.1} parent=5 // pred_region
        // Predicated region
        $region25: #{tpu_custom_call.1} parent=23 // pred_check
          %p175 = pneg %p48
        $region26: #{tpu_custom_call.1} parent=23 // pred_check_branch
          %177 = sbr.rel (%p175) target = $region28
        $region27: #{tpu_custom_call.1} parent=23 // pred_region
          %s178 = sand.u32 %s38, 1
          %s179 = scalar_lea.sflag [#allocation3], %s178
          %s180 = sand.u32 %s38, 1
          %s181 = smul.addr %s180, 128
          %s182 = scalar_lea.vmem [#allocation2], %s181
          %s183 = smul.u32 16, %s23
          %185 = vsyncadd %s179, 0
          %s186 = smul.addr %s183, 2
          %s187 = smul.addr %s186, 4
          %s188 = scalar_lea.hbm %s0, %s187
          %s189 = sshll.u32 %s188, 4
          %s190 = int_to_ptr.hbm [resolvable:$true] %s189
          %s191 = sshll.u32 %s182, 4
          %s192 = int_to_ptr.vmem [resolvable:$true] %s191
          %197 = dma.hbm_to_vmem [thread:$0]  %s190, 2048, %s192, %s179, 128, 128, 8
        $region28: #{tpu_custom_call.1} parent=23 // pred_fallthru
          _
      $region24: #{tpu_custom_call.1} parent=5 // pred_fallthru
        _
      %p198 = scmp.le.s32.totalorder 1, %s16
      %p199 = scmp.lt.s32.totalorder %s16, 5
      %p200 = pnand %p198, %p199
      %p201 = pneg %p200
      // Predicated region
      $region29: #{tpu_custom_call.1} parent=5 // pred_check
        _
      $region30: #{tpu_custom_call.1} parent=5 // pred_check_branch
        %203 = sbr.rel (%p200) target = $region32
      $region31: #{tpu_custom_call.1} parent=5 // pred_region
        %s204 = ssub.s32 %s16, 1
        %s205 = sand.u32 %s41, 1
        %s206 = scalar_lea.sflag [#allocation3], %s205
        %s207 = sand.u32 %s41, 1
        %s208 = smul.addr %s207, 128
        %s209 = scalar_lea.vmem [#allocation2], %s208
        // Predicated region
        $region33: #{tpu_custom_call.1} parent=31 // pred_check
          %p210 = pneg %p54
        $region34: #{tpu_custom_call.1} parent=31 // pred_check_branch
          %212 = sbr.rel (%p210) target = $region36
        $region35: #{tpu_custom_call.1} parent=31 // pred_region
          %214 = dma.done %s206, 2048
        $region36: #{tpu_custom_call.1} parent=31 // pred_fallthru
          _
        // Predicated region
        $region37: #{tpu_custom_call.1} parent=31 // pred_check
          %p215 = pneg %p80
        $region38: #{tpu_custom_call.1} parent=31 // pred_check_branch
          %217 = sbr.rel (%p215) target = $region40
        $region39: #{tpu_custom_call.1} parent=31 // pred_region
          %219 = dma.done [#allocation6], 2048
        $region40: #{tpu_custom_call.1} parent=31 // pred_fallthru
          _
        %s220 = sand.u32 %s41, 1
        %s221 = scalar_lea.sflag [#allocation3], %s220
        %s222 = sand.u32 %s41, 1
        %s223 = smul.addr %s222, 128
        %s224 = scalar_lea.vmem [#allocation2], %s223
        %p225 = pneg %p54
        %p226 = pneg %p51
        %p227 = pneg %p80
        %p228 = pneg %p77
        %p229 = scmp.lt.s32.totalorder %s26, 0
        %s230 = scalar_select %p229, %s26, 0
        %s231 = scalar_lea.vmem %s2, %s230
        %p232 = pneg %p106
        %p233 = pneg %p103
        %p234 = pneg %p134
        %p235 = pneg %p131
        %s236 = sand.u32 %s121, 1
        %s237 = scalar_lea.sflag [#allocation4], %s236
        %s238 = sand.u32 %s121, 1
        %s239 = smul.addr %s238, 64
        %s240 = scalar_lea.vmem [#allocation7], %s239
        %s241 = smul.u32 16, %s25
        %p242 = scmp.lt.s32.totalorder %s26, 0
        %s243 = scalar_select %p242, %s26, 0
        %s244 = scalar_lea.vmem %s2, %s243
        %s245 = smul.u32 16, %s25
        %v246 = vld [vmem:[%s209] sm:$0xff]
        %v247 = vld [vmem:[%s209 + $0x8] sm:$0xff]
        %v248 = vld [vmem:[%s209 + $0x10] sm:$0xff]
        %v249 = vld [vmem:[%s209 + $0x18] sm:$0xff]
        %v250 = vld [vmem:[%s209 + $0x20] sm:$0xff]
        %v251 = vld [vmem:[%s209 + $0x28] sm:$0xff]
        %v252 = vld [vmem:[%s209 + $0x30] sm:$0xff]
        %v253 = vld [vmem:[%s209 + $0x38] sm:$0xff]
        %v254 = vld [vmem:[%s209 + $0x40] sm:$0xff]
        %v255 = vld [vmem:[%s209 + $0x48] sm:$0xff]
        %v256 = vld [vmem:[%s209 + $0x50] sm:$0xff]
        %v257 = vld [vmem:[%s209 + $0x58] sm:$0xff]
        %v258 = vld [vmem:[%s209 + $0x60] sm:$0xff]
        %v259 = vld [vmem:[%s209 + $0x68] sm:$0xff]
        %v260 = vld [vmem:[%s209 + $0x70] sm:$0xff]
        %v261 = vld [vmem:[%s209 + $0x78] sm:$0xff]
        %v262 = vld [vmem:[#allocation5] sm:$0xf]
        %v263 = vld [vmem:[#allocation5 + $0x4] sm:$0xf]
        %v264 = vld [vmem:[#allocation5 + $0x8] sm:$0xf]
        %v265 = vld [vmem:[#allocation5 + $0xc] sm:$0xf]
        %v266 = vld [vmem:[#allocation5 + $0x10] sm:$0xf]
        %v267 = vld [vmem:[#allocation5 + $0x14] sm:$0xf]
        %v268 = vld [vmem:[#allocation5 + $0x18] sm:$0xf]
        %v269 = vld [vmem:[#allocation5 + $0x1c] sm:$0xf]
        %v270 = vld [vmem:[#allocation5 + $0x20] sm:$0xf]
        %v271 = vld [vmem:[#allocation5 + $0x24] sm:$0xf]
        %v272 = vld [vmem:[#allocation5 + $0x28] sm:$0xf]
        %v273 = vld [vmem:[#allocation5 + $0x2c] sm:$0xf]
        %v274 = vld [vmem:[#allocation5 + $0x30] sm:$0xf]
        %v275 = vld [vmem:[#allocation5 + $0x34] sm:$0xf]
        %v276 = vld [vmem:[#allocation5 + $0x38] sm:$0xf]
        %v277 = vld [vmem:[#allocation5 + $0x3c] sm:$0xf]
        %v278 = vld [vmem:[#allocation5 + $0x40] sm:$0xf]
        %v279 = vld [vmem:[#allocation5 + $0x44] sm:$0xf]
        %v280 = vld [vmem:[#allocation5 + $0x48] sm:$0xf]
        %v281 = vld [vmem:[#allocation5 + $0x4c] sm:$0xf]
        %v282 = vld [vmem:[#allocation5 + $0x50] sm:$0xf]
        %v283 = vld [vmem:[#allocation5 + $0x54] sm:$0xf]
        %v284 = vld [vmem:[#allocation5 + $0x58] sm:$0xf]
        %v285 = vld [vmem:[#allocation5 + $0x5c] sm:$0xf]
        %v286 = vld [vmem:[#allocation5 + $0x60] sm:$0xf]
        %v287 = vld [vmem:[#allocation5 + $0x64] sm:$0xf]
        %v288 = vld [vmem:[#allocation5 + $0x68] sm:$0xf]
        %v289 = vld [vmem:[#allocation5 + $0x6c] sm:$0xf]
        %v290 = vld [vmem:[#allocation5 + $0x70] sm:$0xf]
        %v291 = vld [vmem:[#allocation5 + $0x74] sm:$0xf]
        %v292 = vld [vmem:[#allocation5 + $0x78] sm:$0xf]
        %v293 = vld [vmem:[#allocation5 + $0x7c] sm:$0xf]
        %v294 = vld [vmem:[%s244] sm:$0x1]
        %v296 = vperm.slane %v294, 0
        %v314 = vunpack.c.l.b16 %v246
        %v315 = vunpack.c.h.b16 %v246
        %v316 = vunpack.c.l.b16 %v247
        %v317 = vunpack.c.h.b16 %v247
        %v318 = vunpack.c.l.b16 %v248
        %v319 = vunpack.c.h.b16 %v248
        %v320 = vunpack.c.l.b16 %v249
        %v321 = vunpack.c.h.b16 %v249
        %v322 = vunpack.c.l.b16 %v250
        %v323 = vunpack.c.h.b16 %v250
        %v324 = vunpack.c.l.b16 %v251
        %v325 = vunpack.c.h.b16 %v251
        %v326 = vunpack.c.l.b16 %v252
        %v327 = vunpack.c.h.b16 %v252
        %v328 = vunpack.c.l.b16 %v253
        %v329 = vunpack.c.h.b16 %v253
        %v330 = vunpack.c.l.b16 %v254
        %v331 = vunpack.c.h.b16 %v254
        %v332 = vunpack.c.l.b16 %v255
        %v333 = vunpack.c.h.b16 %v255
        %v334 = vunpack.c.l.b16 %v256
        %v335 = vunpack.c.h.b16 %v256
        %v336 = vunpack.c.l.b16 %v257
        %v337 = vunpack.c.h.b16 %v257
        %v338 = vunpack.c.l.b16 %v258
        %v339 = vunpack.c.h.b16 %v258
        %v340 = vunpack.c.l.b16 %v259
        %v341 = vunpack.c.h.b16 %v259
        %v342 = vunpack.c.l.b16 %v260
        %v343 = vunpack.c.h.b16 %v260
        %v344 = vunpack.c.l.b16 %v261
        %v345 = vunpack.c.h.b16 %v261
        %v346 = vpack.c.b16 %v316, %v314
        %v347 = vpack.c.b16 %v317, %v315
        %v348 = vpack.c.b16 %v320, %v318
        %v349 = vpack.c.b16 %v321, %v319
        %v350 = vpack.c.b16 %v324, %v322
        %v351 = vpack.c.b16 %v325, %v323
        %v352 = vpack.c.b16 %v328, %v326
        %v353 = vpack.c.b16 %v329, %v327
        %v354 = vpack.c.b16 %v332, %v330
        %v355 = vpack.c.b16 %v333, %v331
        %v356 = vpack.c.b16 %v336, %v334
        %v357 = vpack.c.b16 %v337, %v335
        %v358 = vpack.c.b16 %v340, %v338
        %v359 = vpack.c.b16 %v341, %v339
        %v360 = vpack.c.b16 %v344, %v342
        %v361 = vpack.c.b16 %v345, %v343
        %v410 = vunpack.c.l.b16 %v262
        %v411 = vunpack.c.l.b16 %v263
        %v412 = vunpack.c.l.b16 %v264
        %v413 = vunpack.c.l.b16 %v265
        %v414 = vunpack.c.l.b16 %v266
        %v415 = vunpack.c.l.b16 %v267
        %v416 = vunpack.c.l.b16 %v268
        %v417 = vunpack.c.l.b16 %v269
        %v418 = vunpack.c.l.b16 %v270
        %v419 = vunpack.c.l.b16 %v271
        %v420 = vunpack.c.l.b16 %v272
        %v421 = vunpack.c.l.b16 %v273
        %v422 = vunpack.c.l.b16 %v274
        %v423 = vunpack.c.l.b16 %v275
        %v424 = vunpack.c.l.b16 %v276
        %v425 = vunpack.c.l.b16 %v277
        %v426 = vunpack.c.l.b16 %v278
        %v427 = vunpack.c.l.b16 %v279
        %v428 = vunpack.c.l.b16 %v280
        %v429 = vunpack.c.l.b16 %v281
        %v430 = vunpack.c.l.b16 %v282
        %v431 = vunpack.c.l.b16 %v283
        %v432 = vunpack.c.l.b16 %v284
        %v433 = vunpack.c.l.b16 %v285
        %v434 = vunpack.c.l.b16 %v286
        %v435 = vunpack.c.l.b16 %v287
        %v436 = vunpack.c.l.b16 %v288
        %v437 = vunpack.c.l.b16 %v289
        %v438 = vunpack.c.l.b16 %v290
        %v439 = vunpack.c.l.b16 %v291
        %v440 = vunpack.c.l.b16 %v292
        %v441 = vunpack.c.l.b16 %v293
        %v442 = vpack.c.b16 %v411, %v410
        %v443 = vpack.c.b16 %v413, %v412
        %v444 = vpack.c.b16 %v415, %v414
        %v445 = vpack.c.b16 %v417, %v416
        %v446 = vpack.c.b16 %v419, %v418
        %v447 = vpack.c.b16 %v421, %v420
        %v448 = vpack.c.b16 %v423, %v422
        %v449 = vpack.c.b16 %v425, %v424
        %v450 = vpack.c.b16 %v427, %v426
        %v451 = vpack.c.b16 %v429, %v428
        %v452 = vpack.c.b16 %v431, %v430
        %v453 = vpack.c.b16 %v433, %v432
        %v454 = vpack.c.b16 %v435, %v434
        %v455 = vpack.c.b16 %v437, %v436
        %v456 = vpack.c.b16 %v439, %v438
        %v457 = vpack.c.b16 %v441, %v440
        %474 = vmatpush.bf16.msra.mxu0 %v449
        %475 = vmatpush.bf16.msra.mxu0 %v448
        %476 = vmatpush.bf16.msra.mxu0 %v447
        %477 = vmatpush.bf16.msra.mxu0 %v446
        %478 = vmatpush.bf16.msra.mxu0 %v445
        %479 = vmatpush.bf16.msra.mxu0 %v444
        %480 = vmatpush.bf16.msra.mxu0 %v443
        %481 = vmatpush.bf16.msra.mxu0 %v442
        %482 = vmatmul.bf16.gmra.mxu0 %v346
        %v483 = vpop.f32.mrf.mxu0
        %v484 = vadd.f32 %v296, %v483
        %v485 = vpop.f32.mrf.mxu0
        %v486 = vadd.f32 %v296, %v485
        %487 = vmatmul.bf16.gmra.mxu0 %v348
        %v488 = vpop.f32.mrf.mxu0
        %v489 = vadd.f32 %v296, %v488
        %v490 = vpop.f32.mrf.mxu0
        %v491 = vadd.f32 %v296, %v490
        %492 = vmatmul.bf16.gmra.mxu0 %v350
        %v493 = vpop.f32.mrf.mxu0
        %v494 = vadd.f32 %v296, %v493
        %v495 = vpop.f32.mrf.mxu0
        %v496 = vadd.f32 %v296, %v495
        %497 = vmatmul.bf16.gmra.mxu0 %v352
        %v498 = vpop.f32.mrf.mxu0
        %v499 = vadd.f32 %v296, %v498
        %v500 = vpop.f32.mrf.mxu0
        %v501 = vadd.f32 %v296, %v500
        %502 = vmatmul.bf16.gmra.mxu0 %v354
        %v503 = vpop.f32.mrf.mxu0
        %v504 = vadd.f32 %v296, %v503
        %v505 = vpop.f32.mrf.mxu0
        %v506 = vadd.f32 %v296, %v505
        %507 = vmatmul.bf16.gmra.mxu0 %v356
        %v508 = vpop.f32.mrf.mxu0
        %v509 = vadd.f32 %v296, %v508
        %v510 = vpop.f32.mrf.mxu0
        %v511 = vadd.f32 %v296, %v510
        %512 = vmatmul.bf16.gmra.mxu0 %v358
        %v513 = vpop.f32.mrf.mxu0
        %v514 = vadd.f32 %v296, %v513
        %v515 = vpop.f32.mrf.mxu0
        %v516 = vadd.f32 %v296, %v515
        %517 = vmatmul.bf16.gmra.mxu0 %v360
        %v518 = vpop.f32.mrf.mxu0
        %v519 = vadd.f32 %v296, %v518
        %v520 = vpop.f32.mrf.mxu0
        %v521 = vadd.f32 %v296, %v520
        %522 = vdwg.mxu0
        %523 = vmatpush.bf16.msra.mxu0 %v457
        %524 = vmatpush.bf16.msra.mxu0 %v456
        %525 = vmatpush.bf16.msra.mxu0 %v455
        %526 = vmatpush.bf16.msra.mxu0 %v454
        %527 = vmatpush.bf16.msra.mxu0 %v453
        %528 = vmatpush.bf16.msra.mxu0 %v452
        %529 = vmatpush.bf16.msra.mxu0 %v451
        %530 = vmatpush.bf16.msra.mxu0 %v450
        %531 = vmatmul.bf16.gmra.mxu0 %v347
        %v532 = vpop.f32.mrf.mxu0
        %v533 = vadd.f32 %v484, %v532
        %v534 = vpop.f32.mrf.mxu0
        %v535 = vadd.f32 %v486, %v534
        %536 = vmatmul.bf16.gmra.mxu0 %v349
        %v537 = vpop.f32.mrf.mxu0
        %v538 = vadd.f32 %v489, %v537
        %v539 = vpop.f32.mrf.mxu0
        %v540 = vadd.f32 %v491, %v539
        %541 = vmatmul.bf16.gmra.mxu0 %v351
        %v542 = vpop.f32.mrf.mxu0
        %v543 = vadd.f32 %v494, %v542
        %v544 = vpop.f32.mrf.mxu0
        %v545 = vadd.f32 %v496, %v544
        %546 = vmatmul.bf16.gmra.mxu0 %v353
        %v547 = vpop.f32.mrf.mxu0
        %v548 = vadd.f32 %v499, %v547
        %v549 = vpop.f32.mrf.mxu0
        %v550 = vadd.f32 %v501, %v549
        %551 = vmatmul.bf16.gmra.mxu0 %v355
        %v552 = vpop.f32.mrf.mxu0
        %v553 = vadd.f32 %v504, %v552
        %v554 = vpop.f32.mrf.mxu0
        %v555 = vadd.f32 %v506, %v554
        %556 = vmatmul.bf16.gmra.mxu0 %v357
        %v557 = vpop.f32.mrf.mxu0
        %v558 = vadd.f32 %v509, %v557
        %v559 = vpop.f32.mrf.mxu0
        %v560 = vadd.f32 %v511, %v559
        %561 = vmatmul.bf16.gmra.mxu0 %v359
        %v562 = vpop.f32.mrf.mxu0
        %v563 = vadd.f32 %v514, %v562
        %v564 = vpop.f32.mrf.mxu0
        %v565 = vadd.f32 %v516, %v564
        %566 = vmatmul.bf16.gmra.mxu0 %v361
        %v567 = vpop.f32.mrf.mxu0
        %v568 = vadd.f32 %v519, %v567
        %v569 = vpop.f32.mrf.mxu0
        %v570 = vadd.f32 %v521, %v569
        %571 = vdwg.mxu0
        %v572 = vmax.f32 %v533, 0.0
        %v573 = vmax.f32 %v535, 0.0
        %v574 = vmax.f32 %v538, 0.0
        %v575 = vmax.f32 %v540, 0.0
        %v576 = vmax.f32 %v543, 0.0
        %v577 = vmax.f32 %v545, 0.0
        %v578 = vmax.f32 %v548, 0.0
        %v579 = vmax.f32 %v550, 0.0
        %v580 = vmax.f32 %v553, 0.0
        %v581 = vmax.f32 %v555, 0.0
        %v582 = vmax.f32 %v558, 0.0
        %v583 = vmax.f32 %v560, 0.0
        %v584 = vmax.f32 %v563, 0.0
        %v585 = vmax.f32 %v565, 0.0
        %v586 = vmax.f32 %v568, 0.0
        %v587 = vmax.f32 %v570, 0.0
        %v588 = vpack.c.bf16 %v572, %v572
        %v589 = vpack.c.bf16 %v573, %v573
        %v590 = vpack.c.bf16 %v574, %v574
        %v591 = vpack.c.bf16 %v575, %v575
        %v592 = vpack.c.bf16 %v576, %v576
        %v593 = vpack.c.bf16 %v577, %v577
        %v594 = vpack.c.bf16 %v578, %v578
        %v595 = vpack.c.bf16 %v579, %v579
        %v596 = vpack.c.bf16 %v580, %v580
        %v597 = vpack.c.bf16 %v581, %v581
        %v598 = vpack.c.bf16 %v582, %v582
        %v599 = vpack.c.bf16 %v583, %v583
        %v600 = vpack.c.bf16 %v584, %v584
        %v601 = vpack.c.bf16 %v585, %v585
        %v602 = vpack.c.bf16 %v586, %v586
        %v603 = vpack.c.bf16 %v587, %v587
        %604 = vst [vmem:[%s240] sm:$0xf] %v588
        %605 = vst [vmem:[%s240 + $0x4] sm:$0xf] %v589
        %606 = vst [vmem:[%s240 + $0x8] sm:$0xf] %v590
        %607 = vst [vmem:[%s240 + $0xc] sm:$0xf] %v591
        %608 = vst [vmem:[%s240 + $0x10] sm:$0xf] %v592
        %609 = vst [vmem:[%s240 + $0x14] sm:$0xf] %v593
        %610 = vst [vmem:[%s240 + $0x18] sm:$0xf] %v594
        %611 = vst [vmem:[%s240 + $0x1c] sm:$0xf] %v595
        %612 = vst [vmem:[%s240 + $0x20] sm:$0xf] %v596
        %613 = vst [vmem:[%s240 + $0x24] sm:$0xf] %v597
        %614 = vst [vmem:[%s240 + $0x28] sm:$0xf] %v598
        %615 = vst [vmem:[%s240 + $0x2c] sm:$0xf] %v599
        %616 = vst [vmem:[%s240 + $0x30] sm:$0xf] %v600
        %617 = vst [vmem:[%s240 + $0x34] sm:$0xf] %v601
        %618 = vst [vmem:[%s240 + $0x38] sm:$0xf] %v602
        %619 = vst [vmem:[%s240 + $0x3c] sm:$0xf] %v603
        %s620 = sand.u32 %s121, 1
        %s621 = scalar_lea.sflag [#allocation4], %s620
        %s622 = sand.u32 %s121, 1
        %s623 = smul.addr %s622, 64
        %s624 = scalar_lea.vmem [#allocation7], %s623
        // Predicated region
        $region41: #{tpu_custom_call.1} parent=31 // pred_check
          %p625 = pneg %p131
        $region42: #{tpu_custom_call.1} parent=31 // pred_check_branch
          %627 = sbr.rel (%p625) target = $region44
        $region43: #{tpu_custom_call.1} parent=31 // pred_region
          %s628 = smul.u32 16, %s25
          %630 = vsyncadd %s621, 0
          %s631 = sadd.s32 %s26, %s628
          %s632 = smul.addr %s631, 4
          %s633 = scalar_lea.hbm %s3, %s632
          %s634 = sshll.u32 %s624, 4
          %s635 = int_to_ptr.vmem [resolvable:$true] %s634
          %s636 = sshll.u32 %s633, 4
          %s637 = int_to_ptr.hbm [resolvable:$true] %s636
          %642 = dma.vmem_to_hbm [thread:$0]  %s635, 1024, %s637, %s621, 64, 64, 4
        $region44: #{tpu_custom_call.1} parent=31 // pred_fallthru
          _
      $region32: #{tpu_custom_call.1} parent=5 // pred_fallthru
        _
      %p643 = scmp.le.s32.totalorder 2, %s16
      // Predicated region
      $region45: #{tpu_custom_call.1} parent=5 // pred_check
        %p644 = pneg %p643
      $region46: #{tpu_custom_call.1} parent=5 // pred_check_branch
        %646 = sbr.rel (%p644) target = $region48
      $region47: #{tpu_custom_call.1} parent=5 // pred_region
        %s647 = ssub.s32 %s16, 2
        // Predicated region
        $region49: #{tpu_custom_call.1} parent=47 // pred_check
          %p648 = pneg %p137
        $region50: #{tpu_custom_call.1} parent=47 // pred_check_branch
          %650 = sbr.rel (%p648) target = $region52
        $region51: #{tpu_custom_call.1} parent=47 // pred_region
          %s651 = sand.u32 %s122, 1
          %s652 = scalar_lea.sflag [#allocation4], %s651
          %s653 = sand.u32 %s122, 1
          %s654 = smul.addr %s653, 64
          %s655 = scalar_lea.vmem [#allocation7], %s654
          %657 = dma.done %s652, 1024
        $region52: #{tpu_custom_call.1} parent=47 // pred_fallthru
          _
      $region48: #{tpu_custom_call.1} parent=5 // pred_fallthru
        _
    $region6: #{tpu_custom_call.1} parent=1 // loop_footer
      %s20 = sadd.s32 1, %s16
    $region7: #{tpu_custom_call.1} parent=1 // loop_footer_branch
      %15 = sbr.rel target = $region3
    $region8: #{tpu_custom_call.1} parent=1 // loop_exit
      _
    %658 = vsyncpa [#allocation3], 1
    %s659 = scalar_lea.sflag [#allocation3], 1
    %660 = vsyncpa %s659, 1
    %661 = vsyncpa [#allocation6], 1
    %662 = vsyncpa [#allocation4], 1
    %s663 = scalar_lea.sflag [#allocation4], 1
    %664 = vsyncpa %s663, 1

</llo_original>
